<compile_context>
chip_gen: v7x
topology: tpu7x:2x2x1
jax: 0.10.0
libtpu: 0.0.40
codegen_flags: <defaults>
</compile_context>

<pallas_src>
import jax
import jax.numpy as jnp
import numpy as np
from jax.experimental import pallas as pl
from jax.experimental.pallas import tpu as pltpu

EPS = 1e-5
GROUPS = 32                      # fixed by the PyTorch module
VMEM_LIMIT = 48 * 1024 * 1024    # stay under v7x's 64 MiB physical VMEM


def _pick_row_tile(m):
    """Row tile for the 1x1-conv stages: one full-extent block when small,
    otherwise the largest divisor of m up to 1024 (multiple of 8)."""
    if m <= 1024:
        return m
    for t in (1024, 768, 512, 384, 256, 128, 64, 32, 16, 8):
        if m % t == 0:
            return t
    return m


def _pick_imgs_per_block(n, ho, wo, c):
    """Images per conv2 grid step: raise M per matmul (MXU occupancy) while
    keeping the per-step VMEM footprint modest."""
    best = 1
    for d in range(1, n + 1):
        if n % d:
            continue
        mrows = d * ho * wo
        vmem = (d * (ho + 2) * (wo + 2) * c * 4     # f32 halo scratch
                + 2 * 2 * mrows * c * 2             # double-buffered bf16 in/out
                + mrows * c * 4)                    # f32 accumulator
        if mrows <= 2048 and vmem <= 24 * 1024 * 1024:
            best = d
    return best
    # TODO(synk): for very large spatial dims (where even one image blows the
    # budget) add an H-chunk tiling path with 1-row halos via manual DMA.


# ---------------------------------------------------------------------------
# Kernels
# ---------------------------------------------------------------------------
def _make_conv1_kernel(cmid, has_sc):
    """conv1 1x1 matmul (shortcut 1x1 conv fused into the same wide matmul)
    + per-tile BN partial stats."""

    def kernel(*refs):
        if has_sc:
            x_ref, wf_ref, bsc_ref, y1_ref, ysc_ref, st1_ref, stsc_ref = refs
        else:
            x_ref, wf_ref, y1_ref, st1_ref = refs

        xb = x_ref[...].astype(jnp.bfloat16)
        y = jnp.dot(xb, wf_ref[...], preferred_element_type=jnp.float32)

        y1 = y[:, :cmid]
        y1_ref[...] = y1.astype(y1_ref.dtype)
        st1_ref[0] = jnp.concatenate(
            [jnp.sum(y1, axis=0, keepdims=True),
             jnp.sum(y1 * y1, axis=0, keepdims=True)], axis=0)

        if has_sc:
            ysc = y[:, cmid:] + bsc_ref[...]
            ysc_ref[...] = ysc.astype(ysc_ref.dtype)
            stsc_ref[0] = jnp.concatenate(
                [jnp.sum(ysc, axis=0, keepdims=True),
                 jnp.sum(ysc * ysc, axis=0, keepdims=True)], axis=0)

    return kernel


def _conv2_kernel(y1_ref, s1_ref, t1_ref, w2_ref, y2_ref, st_ref, pad_ref):
    """BN1-apply + ReLU on load, 3x3 grouped conv as 9 accumulated K=Cmid
    matmuls against a block-diagonal dense weight, + per-tile BN2 partials.

    y1_ref : (imgs, Ho, Wo, Cmid) raw conv1 output (bf16).
    w2_ref : (9, Cmid, Cmid) block-diagonal dense weight (bf16), tap-major.
    pad_ref: (imgs, Ho+2, Wo+2, Cmid) f32 VMEM scratch (zero-padded halo).
    """
    imgs, ho, wo, c = y1_ref.shape
    mb = imgs * ho * wo

    # Apply previous-stage BN (scale/shift form) + ReLU on the fly.
    h = y1_ref[...].astype(jnp.float32)
    h = jnp.maximum(h * s1_ref[...].reshape(1, 1, 1, c)
                    + t1_ref[...].reshape(1, 1, 1, c), 0.0)

    # Zero only the halo border (re-done every step: cheap, and correct even
    # when the grid is split across TensorCores), then write the interior.
    pad_ref[:, pl.ds(0, 1), :, :] = jnp.zeros((imgs, 1, wo + 2, c), jnp.float32)
    pad_ref[:, pl.ds(ho + 1, 1), :, :] = jnp.zeros((imgs, 1, wo + 2, c),
                                                   jnp.float32)
    pad_ref[:, :, pl.ds(0, 1), :] = jnp.zeros((imgs, ho + 2, 1, c), jnp.float32)
    pad_ref[:, :, pl.ds(wo + 1, 1), :] = jnp.zeros((imgs, ho + 2, 1, c),
                                                   jnp.float32)
    pad_ref[:, pl.ds(1, ho), pl.ds(1, wo), :] = h

    # 9 shifted taps -> 9 accumulated matmuls (no im2col / lane-axis concat).
    # TODO(synk): a bf16 halo scratch or pltpu.roll-built taps would halve the
    # remaining in-VMEM relayout traffic of these unaligned tap slices.
    acc = jnp.zeros((mb, c), jnp.float32)
    t = 0
    for ky in range(3):
        for kx in range(3):
            tap = pad_ref[:, pl.ds(ky, ho), pl.ds(kx, wo), :]
            tap = tap.reshape(mb, c).astype(jnp.bfloat16)
            acc = acc + jnp.dot(tap, w2_ref[t],
                                preferred_element_type=jnp.float32)
            t += 1

    y2_ref[...] = acc.astype(y2_ref.dtype)
    st_ref[0] = jnp.concatenate(
        [jnp.sum(acc, axis=0, keepdims=True),
         jnp.sum(acc * acc, axis=0, keepdims=True)], axis=0)


def _conv3_kernel(y2_ref, s2_ref, t2_ref, w3_ref, y3_ref, st_ref):
    """BN2-apply + ReLU on load, conv3 1x1 matmul, + per-tile BN3 partials."""
    h2 = jnp.maximum(y2_ref[...].astype(jnp.float32) * s2_ref[...]
                     + t2_ref[...], 0.0)
    y3 = jnp.dot(h2.astype(jnp.bfloat16), w3_ref[...],
                 preferred_element_type=jnp.float32)
    y3_ref[...] = y3.astype(y3_ref.dtype)
    st_ref[0] = jnp.concatenate(
        [jnp.sum(y3, axis=0, keepdims=True),
         jnp.sum(y3 * y3, axis=0, keepdims=True)], axis=0)


def _bn_add_relu_kernel(y3_ref, s3_ref, t3_ref, sc_ref, ssc_ref, tsc_ref,
                        o_ref):
    """Apply BN3 and shortcut-BN scale/shift, residual add, ReLU (bf16 out)."""
    a = y3_ref[...].astype(jnp.float32) * s3_ref[...] + t3_ref[...]
    b = sc_ref[...].astype(jnp.float32) * ssc_ref[...] + tsc_ref[...]
    o_ref[...] = jnp.maximum(a + b, 0.0).astype(o_ref.dtype)


# ---------------------------------------------------------------------------
# pallas_call wrappers
# ---------------------------------------------------------------------------
def _conv1_call(x_rows, wf_bf, bias_s, cmid, tm, has_sc):
    m, cin = x_rows.shape
    ntot = wf_bf.shape[1]
    nt = m // tm

    in_specs = [pl.BlockSpec((tm, cin), lambda i: (i, 0)),
                pl.BlockSpec((cin, ntot), lambda i: (0, 0))]
    args = [x_rows, wf_bf]
    out_shape = [jax.ShapeDtypeStruct((m, cmid), jnp.bfloat16)]
    out_specs = [pl.BlockSpec((tm, cmid), lambda i: (i, 0))]
    if has_sc:
        cout = ntot - cmid
        in_specs.append(pl.BlockSpec((1, cout), lambda i: (0, 0)))
        args.append(bias_s)
        out_shape.append(jax.ShapeDtypeStruct((m, cout), jnp.bfloat16))
        out_specs.append(pl.BlockSpec((tm, cout), lambda i: (i, 0)))
    out_shape.append(jax.ShapeDtypeStruct((nt, 2, cmid), jnp.float32))
    out_specs.append(pl.BlockSpec((1, 2, cmid), lambda i: (i, 0, 0)))
    if has_sc:
        out_shape.append(jax.ShapeDtypeStruct((nt, 2, cout), jnp.float32))
        out_specs.append(pl.BlockSpec((1, 2, cout), lambda i: (i, 0, 0)))

    return pl.pallas_call(
        _make_conv1_kernel(cmid, has_sc),
        grid=(nt,),
        in_specs=in_specs,
        out_specs=tuple(out_specs),
        out_shape=tuple(out_shape),
        compiler_params=pltpu.CompilerParams(
            dimension_semantics=("parallel",),
            vmem_limit_bytes=VMEM_LIMIT),
    )(*args)


def _conv2_call(y1_img, s1, t1, w2_bf, imgs):
    n, ho, wo, c = y1_img.shape
    mb = imgs * ho * wo
    m = n * ho * wo
    nt = n // imgs
    return pl.pallas_call(
        _conv2_kernel,
        grid=(nt,),
        in_specs=[pl.BlockSpec((imgs, ho, wo, c), lambda i: (i, 0, 0, 0)),
                  pl.BlockSpec((1, c), lambda i: (0, 0)),
                  pl.BlockSpec((1, c), lambda i: (0, 0)),
                  pl.BlockSpec((9, c, c), lambda i: (0, 0, 0))],
        out_specs=(pl.BlockSpec((mb, c), lambda i: (i, 0)),
                   pl.BlockSpec((1, 2, c), lambda i: (i, 0, 0))),
        out_shape=(jax.ShapeDtypeStruct((m, c), jnp.bfloat16),
                   jax.ShapeDtypeStruct((nt, 2, c), jnp.float32)),
        scratch_shapes=[pltpu.VMEM((imgs, ho + 2, wo + 2, c), jnp.float32)],
        compiler_params=pltpu.CompilerParams(
            dimension_semantics=("parallel",),
            vmem_limit_bytes=VMEM_LIMIT),
    )(y1_img, s1, t1, w2_bf)


def _conv3_call(y2_rows, s2, t2, w3_bf, tm):
    m, cmid = y2_rows.shape
    cout = w3_bf.shape[1]
    nt = m // tm
    return pl.pallas_call(
        _conv3_kernel,
        grid=(nt,),
        in_specs=[pl.BlockSpec((tm, cmid), lambda i: (i, 0)),
                  pl.BlockSpec((1, cmid), lambda i: (0, 0)),
                  pl.BlockSpec((1, cmid), lambda i: (0, 0)),
                  pl.BlockSpec((cmid, cout), lambda i: (0, 0))],
        out_specs=(pl.BlockSpec((tm, cout), lambda i: (i, 0)),
                   pl.BlockSpec((1, 2, cout), lambda i: (i, 0, 0))),
        out_shape=(jax.ShapeDtypeStruct((m, cout), jnp.bfloat16),
                   jax.ShapeDtypeStruct((nt, 2, cout), jnp.float32)),
        compiler_params=pltpu.CompilerParams(
            dimension_semantics=("parallel",),
            vmem_limit_bytes=VMEM_LIMIT),
    )(y2_rows, s2, t2, w3_bf)


def _bn_add_relu_call(y3, s3, t3, sc, ssc, tsc, tm):
    m, cout = y3.shape
    return pl.pallas_call(
        _bn_add_relu_kernel,
        grid=(m // tm,),
        in_specs=[pl.BlockSpec((tm, cout), lambda i: (i, 0)),
                  pl.BlockSpec((1, cout), lambda i: (0, 0)),
                  pl.BlockSpec((1, cout), lambda i: (0, 0)),
                  pl.BlockSpec((tm, cout), lambda i: (i, 0)),
                  pl.BlockSpec((1, cout), lambda i: (0, 0)),
                  pl.BlockSpec((1, cout), lambda i: (0, 0))],
        out_specs=pl.BlockSpec((tm, cout), lambda i: (i, 0)),
        out_shape=jax.ShapeDtypeStruct((m, cout), jnp.bfloat16),
        compiler_params=pltpu.CompilerParams(
            dimension_semantics=("parallel",),
            vmem_limit_bytes=VMEM_LIMIT),
    )(y3, s3, t3, sc, ssc, tsc)


# ---------------------------------------------------------------------------
# BN finalization from per-tile partial [sum; sumsq] blocks (tiny; plain JAX)
# ---------------------------------------------------------------------------
def _bn_scale_shift(stats, count, gamma, beta):
    # stats: (num_tiles, 2, C).
    # TODO(synk): a parallel-Welford merge of per-tile (mean,M2) would improve
    # conditioning for very large M; sum/sumsq in f32 is fine at these sizes.
    ssum = jnp.sum(stats[:, 0, :], axis=0, keepdims=True)
    ssq = jnp.sum(stats[:, 1, :], axis=0, keepdims=True)
    mean = ssum / count
    var = jnp.maximum(ssq / count - mean * mean, 0.0)
    scale = gamma * jax.lax.rsqrt(var + EPS)
    shift = beta - mean * scale
    return scale, shift


# ---------------------------------------------------------------------------
# Block forward (wrapper glue: NCHW <-> rows, weight casts, per-stage calls)
# ---------------------------------------------------------------------------
def block_forward(x_nchw, p, stride=1, is_shortcut=False):
    x = jnp.transpose(x_nchw, (0, 2, 3, 1)).astype(jnp.float32)   # NHWC
    xs = x[:, ::stride, ::stride, :]                              # 1x1-conv stride
    n, ho, wo, cin = xs.shape
    m = n * ho * wo
    x_rows = xs.reshape(m, cin)

    cmid = p["w1"].shape[1]
    cout = p["w3"].shape[1]
    if not is_shortcut:
        assert cin == cout and stride == 1, (
            "identity shortcut requires in_channels == out_channels and stride == 1")

    tm = _pick_row_tile(m)

    # stage 1: conv1 matmul (+ shortcut conv fused into the same wide matmul)
    if is_shortcut:
        wf = jnp.concatenate([p["w1"], p["ws"]], axis=1).astype(jnp.bfloat16)
        y1, ysc, st1, stsc = _conv1_call(x_rows, wf, p["bias_s"], cmid, tm, True)
    else:
        wf = p["w1"].astype(jnp.bfloat16)
        y1, st1 = _conv1_call(x_rows, wf, None, cmid, tm, False)
    s1, t1 = _bn_scale_shift(st1, m, p["g1"], p["b1"])

    # stage 2: grouped 3x3 conv (BN1-apply + ReLU fused on load)
    imgs = _pick_imgs_per_block(n, ho, wo, cmid)
    y1_img = y1.reshape(n, ho, wo, cmid)
    y2, st2 = _conv2_call(y1_img, s1, t1, p["w2_dense"].astype(jnp.bfloat16),
                          imgs)
    s2, t2 = _bn_scale_shift(st2, m, p["g2"], p["b2"])

    # stage 3: conv3 matmul (BN2-apply + ReLU fused on load)
    y3, st3 = _conv3_call(y2, s2, t2, p["w3"].astype(jnp.bfloat16), tm)
    s3, t3 = _bn_scale_shift(st3, m, p["g3"], p["b3"])

    # stage 4: BN3-apply + shortcut-BN-apply + residual add + ReLU (bf16 out)
    if is_shortcut:
        ss, ts = _bn_scale_shift(stsc, m, p["gs"], p["bs"])
        sc = ysc
    else:
        sc = x_rows.astype(jnp.bfloat16)
        ss = jnp.ones((1, cout), jnp.float32)
        ts = jnp.zeros((1, cout), jnp.float32)

    out_rows = _bn_add_relu_call(y3, s3, t3, sc, ss, ts, tm)
    out = out_rows.reshape(n, ho, wo, cout).astype(jnp.float32)
    return jnp.transpose(out, (0, 3, 1, 2))   # back to NCHW


# ---------------------------------------------------------------------------
# Deterministic parameter initialization (shapes per the PyTorch __init__)
# ---------------------------------------------------------------------------
def init_params(key, in_channels, out_channels, is_shortcut):
    cmid = out_channels // 2
    assert cmid % GROUPS == 0, "out_channels//2 must be divisible by 32"
    cg = cmid // GROUPS
    ks = jax.random.split(key, 12)

    # PyTorch weight layouts
    w1_pt = jax.random.normal(ks[0], (cmid, in_channels, 1, 1), jnp.float32) * 0.1
    w2_pt = jax.random.normal(ks[1], (cmid, cg, 3, 3), jnp.float32) * 0.1
    w3_pt = jax.random.normal(ks[2], (out_channels, cmid, 1, 1), jnp.float32) * 0.1

    p = {}
    p["w1"] = jnp.transpose(w1_pt[:, :, 0, 0], (1, 0))   # (Cin, Cmid)
    p["w3"] = jnp.transpose(w3_pt[:, :, 0, 0], (1, 0))   # (Cmid, Cout)
    p["w2_pt"] = w2_pt                                   # for the reference check

    # Block-diagonal dense form of the grouped 3x3 weight: (9, Cmid, Cmid)
    # TODO(synk): a group-chunked layout would avoid the 32x FLOP inflation of
    # the dense block-diagonal form (matters only when MXU-bound, e.g. v5e).
    w2k = jnp.transpose(w2_pt, (2, 3, 1, 0)).reshape(9, cg, cmid)  # [k, ci_loc, o]
    dense = jnp.zeros((9, cmid, cmid), jnp.float32)
    for g in range(GROUPS):
        lo, hi = g * cg, (g + 1) * cg
        dense = dense.at[:, lo:hi, lo:hi].set(w2k[:, :, lo:hi])
    p["w2_dense"] = dense                                # (9, Cmid, Cmid)

    def bn_params(k, c):
        k1, k2 = jax.random.split(k)
        g = 1.0 + 0.1 * jax.random.normal(k1, (1, c), jnp.float32)
        b = 0.1 * jax.random.normal(k2, (1, c), jnp.float32)
        return g, b

    p["g1"], p["b1"] = bn_params(ks[3], cmid)
    p["g2"], p["b2"] = bn_params(ks[4], cmid)
    p["g3"], p["b3"] = bn_params(ks[5], out_channels)

    if is_shortcut:
        ws_pt = jax.random.normal(ks[6], (out_channels, in_channels, 1, 1),
                                  jnp.float32) * 0.1
        p["ws"] = jnp.transpose(ws_pt[:, :, 0, 0], (1, 0))
        p["bias_s"] = 0.1 * jax.random.normal(ks[7], (1, out_channels), jnp.float32)
        p["gs"], p["bs"] = bn_params(ks[8], out_channels)
    return p


# ---------------------------------------------------------------------------
# Pure-JAX reference mirroring the kernel dataflow (bf16 matmul operands,
# f32 accumulation, bf16 HBM intermediates, training-mode BN)
# ---------------------------------------------------------------------------
def reference_forward(x_nchw, p, stride, is_shortcut):
    x = jnp.transpose(x_nchw, (0, 2, 3, 1)).astype(jnp.float32)
    xs = x[:, ::stride, ::stride, :]
    n, ho, wo, cin = xs.shape
    m = n * ho * wo
    xr = xs.reshape(m, cin)

    def dot_bf16(a, w):
        return jnp.dot(a.astype(jnp.bfloat16), w.astype(jnp.bfloat16),
                       preferred_element_type=jnp.float32)

    def scale_shift(y, g, b):
        mean = jnp.mean(y, axis=0, keepdims=True)
        var = jnp.maximum(jnp.mean(y * y, axis=0, keepdims=True) - mean * mean, 0.0)
        s = g * jax.lax.rsqrt(var + EPS)
        return s, b - mean * s

    y1 = dot_bf16(xr, p["w1"])
    s1, t1 = scale_shift(y1, p["g1"], p["b1"])
    y1b = y1.astype(jnp.bfloat16).astype(jnp.float32)
    h1 = jnp.maximum(y1b * s1 + t1, 0.0).astype(jnp.bfloat16)

    w_hwio = jnp.transpose(p["w2_pt"], (2, 3, 1, 0)).astype(jnp.bfloat16)
    y2 = jax.lax.conv_general_dilated(
        h1.reshape(n, ho, wo, -1), w_hwio, window_strides=(1, 1), padding="SAME",
        dimension_numbers=("NHWC", "HWIO", "NHWC"),
        feature_group_count=GROUPS,
        preferred_element_type=jnp.float32).reshape(m, -1)
    s2, t2 = scale_shift(y2, p["g2"], p["b2"])
    y2b = y2.astype(jnp.bfloat16).astype(jnp.float32)
    h2 = jnp.maximum(y2b * s2 + t2, 0.0)

    y3 = dot_bf16(h2, p["w3"])
    s3, t3 = scale_shift(y3, p["g3"], p["b3"])
    y3b = y3.astype(jnp.bfloat16).astype(jnp.float32)
    a = y3b * s3 + t3

    if is_shortcut:
        ysc = dot_bf16(xr, p["ws"]) + p["bias_s"]
        ss, ts = scale_shift(ysc, p["gs"], p["bs"])
        b = ysc.astype(jnp.bfloat16).astype(jnp.float32) * ss + ts
    else:
        b = xr.astype(jnp.bfloat16).astype(jnp.float32)
    out = jnp.maximum(a + b, 0.0).astype(jnp.bfloat16).astype(jnp.float32)
    return jnp.transpose(out.reshape(n, ho, wo, -1), (0, 3, 1, 2))


# ---------------------------------------------------------------------------
if __name__ == "__main__":
    key = jax.random.PRNGKey(0)
    k_x, k_p = jax.random.split(key)

    # groups=32 forces out_channels//2 to be a multiple of 32; choose
    # out_channels=256 so channel (lane) widths are >=128 (Cmid=128, Cout=256).
    N, Cin, H, W = 2, 64, 8, 8
    Cout = 256
    stride, is_shortcut = 1, True

    x = jax.random.normal(k_x, (N, Cin, H, W), jnp.float32)
    params = init_params(k_p, Cin, Cout, is_shortcut)

    out = block_forward(x, params, stride=stride, is_shortcut=is_shortcut)
    out = jax.block_until_ready(out)
    assert out.shape == (N, Cout, H, W)

    ref = reference_forward(x, params, stride, is_shortcut)
    np.testing.assert_allclose(np.asarray(out), np.asarray(ref),
                               rtol=2e-2, atol=2e-2)
    print("KERNEL_OK")
</pallas_src>

<mosaic_0001>
module attributes {stable_mosaic.version = 11 : i64} {
  func.func @kernel(%arg0: i32, %arg1: memref<128x64xf32, #tpu.memory_space<vmem>>, %arg2: memref<64x384xbf16, #tpu.memory_space<vmem>>, %arg3: memref<1x256xf32, #tpu.memory_space<vmem>>, %arg4: memref<128x128xbf16, #tpu.memory_space<vmem>>, %arg5: memref<128x256xbf16, #tpu.memory_space<vmem>>, %arg6: memref<1x2x128xf32, #tpu.memory_space<vmem>>, %arg7: memref<1x2x256xf32, #tpu.memory_space<vmem>>) attributes {dimension_semantics = [#tpu.dimension_semantics<parallel>], iteration_bounds = array<i64: 1>, scalar_prefetch = 0 : i64, scratch_operands = 0 : i64, tpu.core_type = #tpu.core_type<tc>, window_params = [{transform_indices = @transform_0, window_bounds = array<i64: 128, 64>}, {pipeline_mode = #tpu.pipeline_mode<synchronous>, transform_indices = @transform_1, window_bounds = array<i64: 64, 384>}, {pipeline_mode = #tpu.pipeline_mode<synchronous>, transform_indices = @transform_2, window_bounds = array<i64: 1, 256>}, {transform_indices = @transform_3, window_bounds = array<i64: 128, 128>}, {transform_indices = @transform_4, window_bounds = array<i64: 128, 256>}, {transform_indices = @transform_5, window_bounds = array<i64: 1, 2, 128>}, {transform_indices = @transform_6, window_bounds = array<i64: 1, 2, 256>}]} {
    %c0 = arith.constant 0 : index
    %c0_0 = arith.constant 0 : index
    %0 = vector.load %arg1[%c0, %c0_0] : memref<128x64xf32, #tpu.memory_space<vmem>>, vector<128x64xf32>
    %1 = arith.truncf %0 : vector<128x64xf32> to vector<128x64xbf16>
    %c0_1 = arith.constant 0 : index
    %c0_2 = arith.constant 0 : index
    %2 = vector.load %arg2[%c0_1, %c0_2] : memref<64x384xbf16, #tpu.memory_space<vmem>>, vector<64x384xbf16>
    %cst = arith.constant dense<0.000000e+00> : vector<128x384xf32>
    %3 = tpu.matmul %1, %2, %cst {dimension_numbers = #tpu.dot_dimension_numbers<[1], [0], [0], [1], [0, 0, 1, 1], [], []>} : vector<128x64xbf16>, vector<64x384xbf16>, vector<128x384xf32> -> vector<128x384xf32>
    %4 = vector.extract_strided_slice %3 {offsets = [0, 0], sizes = [128, 128], strides = [1, 1]} : vector<128x384xf32> to vector<128x128xf32>
    %5 = arith.truncf %4 : vector<128x128xf32> to vector<128x128xbf16>
    %c0_3 = arith.constant 0 : index
    %c0_4 = arith.constant 0 : index
    %6 = vector.load %arg4[%c0_3, %c0_4] : memref<128x128xbf16, #tpu.memory_space<vmem>>, vector<128x128xbf16>
    tpu.vector_store %arg4[%c0_3, %c0_4], %5 {strides = array<i32>} : memref<128x128xbf16, #tpu.memory_space<vmem>>, vector<128x128xbf16>,
    %cst_5 = arith.constant dense<0.000000e+00> : vector<128xf32>
    %7 = vector.multi_reduction <add>, %4, %cst_5 [0] : vector<128x128xf32> to vector<128xf32>
    %8 = vector.shape_cast %7 : vector<128xf32> to vector<1x128xf32>
    %9 = arith.mulf %4, %4 : vector<128x128xf32>
    %cst_6 = arith.constant dense<0.000000e+00> : vector<128xf32>
    %10 = vector.multi_reduction <add>, %9, %cst_6 [0] : vector<128x128xf32> to vector<128xf32>
    %11 = vector.shape_cast %10 : vector<128xf32> to vector<1x128xf32>
    %12 = tpu.concatenate %8, %11 in 0 : vector<1x128xf32>, vector<1x128xf32> -> vector<2x128xf32>
    %c0_7 = arith.constant 0 : index
    %c0_8 = arith.constant 0 : index
    %c0_9 = arith.constant 0 : index
    %13 = vector.load %arg6[%c0_7, %c0_8, %c0_9] : memref<1x2x128xf32, #tpu.memory_space<vmem>>, vector<1x2x128xf32>
    %14 = vector.shape_cast %13 : vector<1x2x128xf32> to vector<2x128xf32>
    %15 = vector.shape_cast %12 : vector<2x128xf32> to vector<1x2x128xf32>
    tpu.vector_store %arg6[%c0_7, %c0_8, %c0_9], %15 {strides = array<i32>} : memref<1x2x128xf32, #tpu.memory_space<vmem>>, vector<1x2x128xf32>,
    %16 = vector.extract_strided_slice %3 {offsets = [0, 128], sizes = [128, 256], strides = [1, 1]} : vector<128x384xf32> to vector<128x256xf32>
    %c0_10 = arith.constant 0 : index
    %c0_11 = arith.constant 0 : index
    %17 = vector.load %arg3[%c0_10, %c0_11] : memref<1x256xf32, #tpu.memory_space<vmem>>, vector<1x256xf32>
    %18 = vector.broadcast %17 : vector<1x256xf32> to vector<128x256xf32>
    %19 = arith.addf %16, %18 : vector<128x256xf32>
    %20 = arith.truncf %19 : vector<128x256xf32> to vector<128x256xbf16>
    %c0_12 = arith.constant 0 : index
    %c0_13 = arith.constant 0 : index
    %21 = vector.load %arg5[%c0_12, %c0_13] : memref<128x256xbf16, #tpu.memory_space<vmem>>, vector<128x256xbf16>
    tpu.vector_store %arg5[%c0_12, %c0_13], %20 {strides = array<i32>} : memref<128x256xbf16, #tpu.memory_space<vmem>>, vector<128x256xbf16>,
    %cst_14 = arith.constant dense<0.000000e+00> : vector<256xf32>
    %22 = vector.multi_reduction <add>, %19, %cst_14 [0] : vector<128x256xf32> to vector<256xf32>
    %23 = vector.shape_cast %22 : vector<256xf32> to vector<1x256xf32>
    %24 = arith.mulf %19, %19 : vector<128x256xf32>
    %cst_15 = arith.constant dense<0.000000e+00> : vector<256xf32>
    %25 = vector.multi_reduction <add>, %24, %cst_15 [0] : vector<128x256xf32> to vector<256xf32>
    %26 = vector.shape_cast %25 : vector<256xf32> to vector<1x256xf32>
    %27 = tpu.concatenate %23, %26 in 0 : vector<1x256xf32>, vector<1x256xf32> -> vector<2x256xf32>
    %c0_16 = arith.constant 0 : index
    %c0_17 = arith.constant 0 : index
    %c0_18 = arith.constant 0 : index
    %28 = vector.load %arg7[%c0_16, %c0_17, %c0_18] : memref<1x2x256xf32, #tpu.memory_space<vmem>>, vector<1x2x256xf32>
    %29 = vector.shape_cast %28 : vector<1x2x256xf32> to vector<2x256xf32>
    %30 = vector.shape_cast %27 : vector<2x256xf32> to vector<1x2x256xf32>
    tpu.vector_store %arg7[%c0_16, %c0_17, %c0_18], %30 {strides = array<i32>} : memref<1x2x256xf32, #tpu.memory_space<vmem>>, vector<1x2x256xf32>,
    return
  }
  func.func @transform_0(%arg0: i32) -> (i32, i32) {
    %c0_i32 = arith.constant 0 : i32
    %c0_i32_0 = arith.constant 0 : i32
    return %arg0, %c0_i32 : i32, i32
  }
  func.func @transform_1(%arg0: i32) -> (i32, i32) {
    %c0_i32 = arith.constant 0 : i32
    %c0_i32_0 = arith.constant 0 : i32
    %c0_i32_1 = arith.constant 0 : i32
    return %c0_i32, %c0_i32_0 : i32, i32
  }
  func.func @transform_2(%arg0: i32) -> (i32, i32) {
    %c0_i32 = arith.constant 0 : i32
    %c0_i32_0 = arith.constant 0 : i32
    %c0_i32_1 = arith.constant 0 : i32
    return %c0_i32, %c0_i32_0 : i32, i32
  }
  func.func @transform_3(%arg0: i32) -> (i32, i32) {
    %c0_i32 = arith.constant 0 : i32
    %c0_i32_0 = arith.constant 0 : i32
    return %arg0, %c0_i32 : i32, i32
  }
  func.func @transform_4(%arg0: i32) -> (i32, i32) {
    %c0_i32 = arith.constant 0 : i32
    %c0_i32_0 = arith.constant 0 : i32
    return %arg0, %c0_i32 : i32, i32
  }
  func.func @transform_5(%arg0: i32) -> (i32, i32, i32) {
    %c0_i32 = arith.constant 0 : i32
    %c0_i32_0 = arith.constant 0 : i32
    %c0_i32_1 = arith.constant 0 : i32
    return %arg0, %c0_i32, %c0_i32_0 : i32, i32, i32
  }
  func.func @transform_6(%arg0: i32) -> (i32, i32, i32) {
    %c0_i32 = arith.constant 0 : i32
    %c0_i32_0 = arith.constant 0 : i32
    %c0_i32_1 = arith.constant 0 : i32
    return %arg0, %c0_i32, %c0_i32_0 : i32, i32, i32
  }
}

</mosaic_0001>

<llo_original>
// kernel: tpu_custom_call.1
$region0: #{tpu_custom_call.1}
  #allocation0 [shape = 'u32[]', space=smem, size = 0x4, offset = 0x4, fixed_abs, tag = 'smem constant byte address 0x4 - core index']
  #allocation1 [shape = 'u32[144,128]{1,0:T(1,128)}', space=vmem, size = 0x12000, scoped, tag = 'internal scratch']
  %s0 = inlined_call_operand.vmem [shape: f32[128,64], index: 0, kind: input, shape index: {}]
  %s1 = inlined_call_operand.vmem [shape: bf16[64,384], index: 1, kind: input, shape index: {}]
  %s2 = inlined_call_operand.vmem [shape: f32[1,256], index: 2, kind: input, shape index: {}]
  %s3 = inlined_call_operand.hbm [shape: bf16[128,128], index: 3, kind: output, shape index: {0}]
  %s4 = inlined_call_operand.hbm [shape: bf16[128,256], index: 4, kind: output, shape index: {1}]
  %s5 = inlined_call_operand.hbm [shape: f32[1,2,128], index: 5, kind: output, shape index: {2}]
  %s6 = inlined_call_operand.hbm [shape: f32[1,2,256], index: 6, kind: output, shape index: {3}]
  %7 = xla_tuple %s3, %s4, %s5, %s6
  %s8 = sld [smem:[#allocation0]]
  $region46: #{tpu_custom_call.1} parent=0
    _
  %s10 = ssub.s32 1, %s8
  %s11 = scalar_select 0, %s10, %s8
  $region1: #{tpu_custom_call.1} parent=0
    #allocation2 [shape = 'u8[32768]{0}', space=vmem, size = 0x8000, scoped, tag = 'output window, operand 0, single buffered']
    #allocation3 [shape = 's32[1]{0}', space=sflag, size = 0x4, scoped, tag = 'scoped memory for tpu_custom_call.1']
    #allocation4 [shape = 'u8[65536]{0}', space=vmem, size = 0x10000, scoped, tag = 'output window, operand 1, single buffered']
    #allocation5 [shape = 's32[1]{0}', space=sflag, size = 0x4, scoped, tag = 'scoped memory for tpu_custom_call.1']
    #allocation6 [shape = 'u8[1024]{0}', space=vmem, size = 0x400, scoped, tag = 'output window, operand 2, single buffered']
    #allocation7 [shape = 'u8[2048]{0}', space=vmem, size = 0x800, scoped, tag = 'output window, operand 3, single buffered']
    #allocation8 [shape = 's32[1]{0}', space=sflag, size = 0x4, scoped, tag = 'scoped memory for tpu_custom_call.1']
    %12 = vsyncpa [#allocation3], 0
    %13 = vsyncpa [#allocation5], 0
    %14 = vsyncpa [#allocation8], 0
    // Predicated region
    $region2: #{tpu_custom_call.1} parent=1 // pred_check
      _
    $region3: #{tpu_custom_call.1} parent=1 // pred_check_branch
      %16 = sbr.rel (0) target = $region5
    $region4: #{tpu_custom_call.1} parent=1 // pred_region
      _
    $region5: #{tpu_custom_call.1} parent=1 // pred_fallthru
      _
    // Predicated region
    $region6: #{tpu_custom_call.1} parent=1 // pred_check
      _
    $region7: #{tpu_custom_call.1} parent=1 // pred_check_branch
      %18 = sbr.rel (0) target = $region9
    $region8: #{tpu_custom_call.1} parent=1 // pred_region
      _
    $region9: #{tpu_custom_call.1} parent=1 // pred_fallthru
      _
    // Predicated region
    $region10: #{tpu_custom_call.1} parent=1 // pred_check
      _
    $region11: #{tpu_custom_call.1} parent=1 // pred_check_branch
      %20 = sbr.rel (0) target = $region13
    $region12: #{tpu_custom_call.1} parent=1 // pred_region
      _
    $region13: #{tpu_custom_call.1} parent=1 // pred_fallthru
      _
    %v22 = vld [vmem:[%s0] sm:$0xff]
    %v23 = vld [vmem:[%s0 + $0x8] sm:$0xff]
    %v24 = vld [vmem:[%s0 + $0x10] sm:$0xff]
    %v25 = vld [vmem:[%s0 + $0x18] sm:$0xff]
    %v26 = vld [vmem:[%s0 + $0x20] sm:$0xff]
    %v27 = vld [vmem:[%s0 + $0x28] sm:$0xff]
    %v28 = vld [vmem:[%s0 + $0x30] sm:$0xff]
    %v29 = vld [vmem:[%s0 + $0x38] sm:$0xff]
    %v30 = vld [vmem:[%s0 + $0x40] sm:$0xff]
    %v31 = vld [vmem:[%s0 + $0x48] sm:$0xff]
    %v32 = vld [vmem:[%s0 + $0x50] sm:$0xff]
    %v33 = vld [vmem:[%s0 + $0x58] sm:$0xff]
    %v34 = vld [vmem:[%s0 + $0x60] sm:$0xff]
    %v35 = vld [vmem:[%s0 + $0x68] sm:$0xff]
    %v36 = vld [vmem:[%s0 + $0x70] sm:$0xff]
    %v37 = vld [vmem:[%s0 + $0x78] sm:$0xff]
    %v38 = vpack.c.bf16 %v23, %v22
    %v39 = vpack.c.bf16 %v25, %v24
    %v40 = vpack.c.bf16 %v27, %v26
    %v41 = vpack.c.bf16 %v29, %v28
    %v42 = vpack.c.bf16 %v31, %v30
    %v43 = vpack.c.bf16 %v33, %v32
    %v44 = vpack.c.bf16 %v35, %v34
    %v45 = vpack.c.bf16 %v37, %v36
    %v46 = vld [vmem:[%s1] sm:$0xff]
    %v47 = vld [vmem:[%s1 + $0x8] sm:$0xf]
    %v48 = vld [vmem:[%s1 + $0xc] sm:$0xff]
    %v49 = vld [vmem:[%s1 + $0x14] sm:$0xf]
    %v50 = vld [vmem:[%s1 + $0x18] sm:$0xff]
    %v51 = vld [vmem:[%s1 + $0x20] sm:$0xf]
    %v52 = vld [vmem:[%s1 + $0x24] sm:$0xff]
    %v53 = vld [vmem:[%s1 + $0x2c] sm:$0xf]
    %v54 = vld [vmem:[%s1 + $0x30] sm:$0xff]
    %v55 = vld [vmem:[%s1 + $0x38] sm:$0xf]
    %v56 = vld [vmem:[%s1 + $0x3c] sm:$0xff]
    %v57 = vld [vmem:[%s1 + $0x44] sm:$0xf]
    %v58 = vld [vmem:[%s1 + $0x48] sm:$0xff]
    %v59 = vld [vmem:[%s1 + $0x50] sm:$0xf]
    %v60 = vld [vmem:[%s1 + $0x54] sm:$0xff]
    %v61 = vld [vmem:[%s1 + $0x5c] sm:$0xf]
    %v78 = vunpack.c.l.b16 %v46
    %v79 = vunpack.c.h.b16 %v46
    %v80 = vunpack.c.l.b16 %v47
    %v81 = vunpack.c.l.b16 %v48
    %v82 = vunpack.c.h.b16 %v48
    %v83 = vunpack.c.l.b16 %v49
    %v84 = vunpack.c.l.b16 %v50
    %v85 = vunpack.c.h.b16 %v50
    %v86 = vunpack.c.l.b16 %v51
    %v87 = vunpack.c.l.b16 %v52
    %v88 = vunpack.c.h.b16 %v52
    %v89 = vunpack.c.l.b16 %v53
    %v90 = vunpack.c.l.b16 %v54
    %v91 = vunpack.c.h.b16 %v54
    %v92 = vunpack.c.l.b16 %v55
    %v93 = vunpack.c.l.b16 %v56
    %v94 = vunpack.c.h.b16 %v56
    %v95 = vunpack.c.l.b16 %v57
    %v96 = vunpack.c.l.b16 %v58
    %v97 = vunpack.c.h.b16 %v58
    %v98 = vunpack.c.l.b16 %v59
    %v99 = vunpack.c.l.b16 %v60
    %v100 = vunpack.c.h.b16 %v60
    %v101 = vunpack.c.l.b16 %v61
    %v102 = vpack.c.b16 %v81, %v78
    %v103 = vpack.c.b16 %v82, %v79
    %v104 = vpack.c.b16 %v83, %v80
    %v105 = vpack.c.b16 %v87, %v84
    %v106 = vpack.c.b16 %v88, %v85
    %v107 = vpack.c.b16 %v89, %v86
    %v108 = vpack.c.b16 %v93, %v90
    %v109 = vpack.c.b16 %v94, %v91
    %v110 = vpack.c.b16 %v95, %v92
    %v111 = vpack.c.b16 %v99, %v96
    %v112 = vpack.c.b16 %v100, %v97
    %v113 = vpack.c.b16 %v101, %v98
    %vm126 = vcmask 523264
    %v128 = vsel %vm126, %v38, 0
    %v131 = vsel %vm126, %v39, 0
    %v134 = vsel %vm126, %v40, 0
    %v137 = vsel %vm126, %v41, 0
    %v140 = vsel %vm126, %v42, 0
    %v143 = vsel %vm126, %v43, 0
    %v146 = vsel %vm126, %v44, 0
    %v149 = vsel %vm126, %v45, 0
    %151 = vmatprep.subr.bf16.mxu0 %v103
    %152 = vmatpush1.bf16.msra.mxu0 %v102
    %153 = vmatprep.subr.bf16.mxu0 %v106
    %154 = vmatpush1.bf16.msra.mxu0 %v105
    %155 = vmatprep.subr.bf16.mxu0 %v109
    %156 = vmatpush1.bf16.msra.mxu0 %v108
    %157 = vmatprep.subr.bf16.mxu0 %v112
    %158 = vmatpush1.bf16.msra.mxu0 %v111
    %159 = vmatprep.subr.bf16.mxu0 0
    %160 = vmatpush1.bf16.msra.mxu0 0
    %161 = vmatprep.subr.bf16.mxu0 0
    %162 = vmatpush1.bf16.msra.mxu0 0
    %163 = vmatprep.subr.bf16.mxu0 0
    %164 = vmatpush1.bf16.msra.mxu0 0
    %165 = vmatprep.subr.bf16.mxu0 0
    %166 = vmatpush1.bf16.msra.mxu0 0
    %167 = vmatprep.subr.bf16.mxu0 0
    %168 = vmatpush1.bf16.msra.mxu0 0
    %169 = vmatprep.subr.bf16.mxu0 0
    %170 = vmatpush1.bf16.msra.mxu0 0
    %171 = vmatprep.subr.bf16.mxu0 0
    %172 = vmatpush1.bf16.msra.mxu0 0
    %173 = vmatprep.subr.bf16.mxu0 0
    %174 = vmatpush1.bf16.msra.mxu0 0
    %175 = vmatprep.subr.bf16.mxu0 0
    %176 = vmatpush1.bf16.msra.mxu0 0
    %177 = vmatprep.subr.bf16.mxu0 0
    %178 = vmatpush1.bf16.msra.mxu0 0
    %179 = vmatprep.subr.bf16.mxu0 0
    %180 = vmatpush1.bf16.msra.mxu0 0
    %181 = vmatprep.subr.bf16.mxu0 0
    %182 = vmatpush1.bf16.msra.mxu0 0
    %183 = vmatprep.mubr.bf16.mxu0 0
    %184 = vmatmul.mubr.bf16.gmra.mrb[0].mxu0 %v128
    %v185 = vpop.f32.mrb[0].mxu0
    %v186 = vadd.f32 0.0, %v185
    %v187 = vpop.f32.mrb[0].mxu0
    %v188 = vadd.f32 0.0, %v187
    %v189 = vpop.f32.mrb[0].mxu0
    %v190 = vadd.f32 0.0, %v189
    %v191 = vpop.f32.mrb[0].mxu0
    %v192 = vadd.f32 0.0, %v191
    %193 = vmatprep.mubr.bf16.mxu0 0
    %194 = vmatmul.mubr.bf16.gmra.mrb[0].mxu0 %v131
    %v195 = vpop.f32.mrb[0].mxu0
    %v196 = vadd.f32 0.0, %v195
    %v197 = vpop.f32.mrb[0].mxu0
    %v198 = vadd.f32 0.0, %v197
    %v199 = vpop.f32.mrb[0].mxu0
    %v200 = vadd.f32 0.0, %v199
    %v201 = vpop.f32.mrb[0].mxu0
    %v202 = vadd.f32 0.0, %v201
    %203 = vmatprep.mubr.bf16.mxu0 0
    %204 = vmatmul.mubr.bf16.gmra.mrb[0].mxu0 %v134
    %v205 = vpop.f32.mrb[0].mxu0
    %v206 = vadd.f32 0.0, %v205
    %v207 = vpop.f32.mrb[0].mxu0
    %v208 = vadd.f32 0.0, %v207
    %v209 = vpop.f32.mrb[0].mxu0
    %v210 = vadd.f32 0.0, %v209
    %v211 = vpop.f32.mrb[0].mxu0
    %v212 = vadd.f32 0.0, %v211
    %213 = vmatprep.mubr.bf16.mxu0 0
    %214 = vmatmul.mubr.bf16.gmra.mrb[0].mxu0 %v137
    %v215 = vpop.f32.mrb[0].mxu0
    %v216 = vadd.f32 0.0, %v215
    %v217 = vpop.f32.mrb[0].mxu0
    %v218 = vadd.f32 0.0, %v217
    %v219 = vpop.f32.mrb[0].mxu0
    %v220 = vadd.f32 0.0, %v219
    %v221 = vpop.f32.mrb[0].mxu0
    %v222 = vadd.f32 0.0, %v221
    %223 = vmatprep.mubr.bf16.mxu0 0
    %224 = vmatmul.mubr.bf16.gmra.mrb[0].mxu0 %v140
    %v225 = vpop.f32.mrb[0].mxu0
    %v226 = vadd.f32 0.0, %v225
    %v227 = vpop.f32.mrb[0].mxu0
    %v228 = vadd.f32 0.0, %v227
    %v229 = vpop.f32.mrb[0].mxu0
    %v230 = vadd.f32 0.0, %v229
    %v231 = vpop.f32.mrb[0].mxu0
    %v232 = vadd.f32 0.0, %v231
    %233 = vmatprep.mubr.bf16.mxu0 0
    %234 = vmatmul.mubr.bf16.gmra.mrb[0].mxu0 %v143
    %v235 = vpop.f32.mrb[0].mxu0
    %v236 = vadd.f32 0.0, %v235
    %v237 = vpop.f32.mrb[0].mxu0
    %v238 = vadd.f32 0.0, %v237
    %v239 = vpop.f32.mrb[0].mxu0
    %v240 = vadd.f32 0.0, %v239
    %v241 = vpop.f32.mrb[0].mxu0
    %v242 = vadd.f32 0.0, %v241
    %243 = vmatprep.mubr.bf16.mxu0 0
    %244 = vmatmul.mubr.bf16.gmra.mrb[0].mxu0 %v146
    %v245 = vpop.f32.mrb[0].mxu0
    %v246 = vadd.f32 0.0, %v245
    %v247 = vpop.f32.mrb[0].mxu0
    %v248 = vadd.f32 0.0, %v247
    %v249 = vpop.f32.mrb[0].mxu0
    %v250 = vadd.f32 0.0, %v249
    %v251 = vpop.f32.mrb[0].mxu0
    %v252 = vadd.f32 0.0, %v251
    %253 = vmatprep.mubr.bf16.mxu0 0
    %254 = vmatmul.mubr.bf16.gmra.mrb[0].mxu0 %v149
    %v255 = vpop.f32.mrb[0].mxu0
    %v256 = vadd.f32 0.0, %v255
    %v257 = vpop.f32.mrb[0].mxu0
    %v258 = vadd.f32 0.0, %v257
    %v259 = vpop.f32.mrb[0].mxu0
    %v260 = vadd.f32 0.0, %v259
    %v261 = vpop.f32.mrb[0].mxu0
    %v262 = vadd.f32 0.0, %v261
    %263 = vdwg.mxu0
    %264 = vmatprep.subr.bf16.mxu0 0
    %265 = vmatpush1.bf16.msra.mxu0 %v104
    %266 = vmatprep.subr.bf16.mxu0 0
    %267 = vmatpush1.bf16.msra.mxu0 %v107
    %268 = vmatprep.subr.bf16.mxu0 0
    %269 = vmatpush1.bf16.msra.mxu0 %v110
    %270 = vmatprep.subr.bf16.mxu0 0
    %271 = vmatpush1.bf16.msra.mxu0 %v113
    %272 = vmatprep.subr.bf16.mxu0 0
    %273 = vmatpush1.bf16.msra.mxu0 0
    %274 = vmatprep.subr.bf16.mxu0 0
    %275 = vmatpush1.bf16.msra.mxu0 0
    %276 = vmatprep.subr.bf16.mxu0 0
    %277 = vmatpush1.bf16.msra.mxu0 0
    %278 = vmatprep.subr.bf16.mxu0 0
    %279 = vmatpush1.bf16.msra.mxu0 0
    %280 = vmatprep.subr.bf16.mxu0 0
    %281 = vmatpush1.bf16.msra.mxu0 0
    %282 = vmatprep.subr.bf16.mxu0 0
    %283 = vmatpush1.bf16.msra.mxu0 0
    %284 = vmatprep.subr.bf16.mxu0 0
    %285 = vmatpush1.bf16.msra.mxu0 0
    %286 = vmatprep.subr.bf16.mxu0 0
    %287 = vmatpush1.bf16.msra.mxu0 0
    %288 = vmatprep.subr.bf16.mxu0 0
    %289 = vmatpush1.bf16.msra.mxu0 0
    %290 = vmatprep.subr.bf16.mxu0 0
    %291 = vmatpush1.bf16.msra.mxu0 0
    %292 = vmatprep.subr.bf16.mxu0 0
    %293 = vmatpush1.bf16.msra.mxu0 0
    %294 = vmatprep.subr.bf16.mxu0 0
    %295 = vmatpush1.bf16.msra.mxu0 0
    %296 = vmatprep.mubr.bf16.mxu0 0
    %297 = vmatmul.mubr.bf16.gmra.mrb[0].mxu0 %v128
    %v298 = vpop.f32.mrb[0].mxu0
    %v299 = vadd.f32 0.0, %v298
    %v300 = vpop.f32.mrb[0].mxu0
    %v301 = vpop.f32.mrb[0].mxu0
    %v302 = vadd.f32 0.0, %v301
    %v303 = vpop.f32.mrb[0].mxu0
    %304 = vmatprep.mubr.bf16.mxu0 0
    %305 = vmatmul.mubr.bf16.gmra.mrb[0].mxu0 %v131
    %v306 = vpop.f32.mrb[0].mxu0
    %v307 = vadd.f32 0.0, %v306
    %v308 = vpop.f32.mrb[0].mxu0
    %v309 = vpop.f32.mrb[0].mxu0
    %v310 = vadd.f32 0.0, %v309
    %v311 = vpop.f32.mrb[0].mxu0
    %312 = vmatprep.mubr.bf16.mxu0 0
    %313 = vmatmul.mubr.bf16.gmra.mrb[0].mxu0 %v134
    %v314 = vpop.f32.mrb[0].mxu0
    %v315 = vadd.f32 0.0, %v314
    %v316 = vpop.f32.mrb[0].mxu0
    %v317 = vpop.f32.mrb[0].mxu0
    %v318 = vadd.f32 0.0, %v317
    %v319 = vpop.f32.mrb[0].mxu0
    %320 = vmatprep.mubr.bf16.mxu0 0
    %321 = vmatmul.mubr.bf16.gmra.mrb[0].mxu0 %v137
    %v322 = vpop.f32.mrb[0].mxu0
    %v323 = vadd.f32 0.0, %v322
    %v324 = vpop.f32.mrb[0].mxu0
    %v325 = vpop.f32.mrb[0].mxu0
    %v326 = vadd.f32 0.0, %v325
    %v327 = vpop.f32.mrb[0].mxu0
    %328 = vmatprep.mubr.bf16.mxu0 0
    %329 = vmatmul.mubr.bf16.gmra.mrb[0].mxu0 %v140
    %v330 = vpop.f32.mrb[0].mxu0
    %v331 = vadd.f32 0.0, %v330
    %v332 = vpop.f32.mrb[0].mxu0
    %v333 = vpop.f32.mrb[0].mxu0
    %v334 = vadd.f32 0.0, %v333
    %v335 = vpop.f32.mrb[0].mxu0
    %336 = vmatprep.mubr.bf16.mxu0 0
    %337 = vmatmul.mubr.bf16.gmra.mrb[0].mxu0 %v143
    %v338 = vpop.f32.mrb[0].mxu0
    %v339 = vadd.f32 0.0, %v338
    %v340 = vpop.f32.mrb[0].mxu0
    %v341 = vpop.f32.mrb[0].mxu0
    %v342 = vadd.f32 0.0, %v341
    %v343 = vpop.f32.mrb[0].mxu0
    %344 = vmatprep.mubr.bf16.mxu0 0
    %345 = vmatmul.mubr.bf16.gmra.mrb[0].mxu0 %v146
    %v346 = vpop.f32.mrb[0].mxu0
    %v347 = vadd.f32 0.0, %v346
    %v348 = vpop.f32.mrb[0].mxu0
    %v349 = vpop.f32.mrb[0].mxu0
    %v350 = vadd.f32 0.0, %v349
    %v351 = vpop.f32.mrb[0].mxu0
    %352 = vmatprep.mubr.bf16.mxu0 0
    %353 = vmatmul.mubr.bf16.gmra.mrb[0].mxu0 %v149
    %v354 = vpop.f32.mrb[0].mxu0
    %v355 = vadd.f32 0.0, %v354
    %v356 = vpop.f32.mrb[0].mxu0
    %v357 = vpop.f32.mrb[0].mxu0
    %v358 = vadd.f32 0.0, %v357
    %v359 = vpop.f32.mrb[0].mxu0
    %360 = vdwg.mxu0
    %v361 = vpack.c.bf16 %v190, %v186
    %v362 = vpack.c.bf16 %v200, %v196
    %v363 = vpack.c.bf16 %v210, %v206
    %v364 = vpack.c.bf16 %v220, %v216
    %v365 = vpack.c.bf16 %v230, %v226
    %v366 = vpack.c.bf16 %v240, %v236
    %v367 = vpack.c.bf16 %v250, %v246
    %v368 = vpack.c.bf16 %v260, %v256
    %v377 = vunpack.c.l.b16 %v361
    %v378 = vunpack.c.h.b16 %v361
    %v379 = vunpack.c.l.b16 %v362
    %v380 = vunpack.c.h.b16 %v362
    %v381 = vunpack.c.l.b16 %v363
    %v382 = vunpack.c.h.b16 %v363
    %v383 = vunpack.c.l.b16 %v364
    %v384 = vunpack.c.h.b16 %v364
    %v385 = vunpack.c.l.b16 %v365
    %v386 = vunpack.c.h.b16 %v365
    %v387 = vunpack.c.l.b16 %v366
    %v388 = vunpack.c.h.b16 %v366
    %v389 = vunpack.c.l.b16 %v367
    %v390 = vunpack.c.h.b16 %v367
    %v391 = vunpack.c.l.b16 %v368
    %v392 = vunpack.c.h.b16 %v368
    %v393 = vpack.c.b16 %v377, %v377
    %v394 = vpack.c.b16 %v378, %v378
    %v395 = vpack.c.b16 %v379, %v379
    %v396 = vpack.c.b16 %v380, %v380
    %v397 = vpack.c.b16 %v381, %v381
    %v398 = vpack.c.b16 %v382, %v382
    %v399 = vpack.c.b16 %v383, %v383
    %v400 = vpack.c.b16 %v384, %v384
    %v401 = vpack.c.b16 %v385, %v385
    %v402 = vpack.c.b16 %v386, %v386
    %v403 = vpack.c.b16 %v387, %v387
    %v404 = vpack.c.b16 %v388, %v388
    %v405 = vpack.c.b16 %v389, %v389
    %v406 = vpack.c.b16 %v390, %v390
    %v407 = vpack.c.b16 %v391, %v391
    %v408 = vpack.c.b16 %v392, %v392
    %425 = vst [vmem:[#allocation2] sm:$0xf] %v393
    %426 = vst [vmem:[#allocation2 + $0x4] sm:$0xf] %v394
    %427 = vst [vmem:[#allocation2 + $0x8] sm:$0xf] %v395
    %428 = vst [vmem:[#allocation2 + $0xc] sm:$0xf] %v396
    %429 = vst [vmem:[#allocation2 + $0x10] sm:$0xf] %v397
    %430 = vst [vmem:[#allocation2 + $0x14] sm:$0xf] %v398
    %431 = vst [vmem:[#allocation2 + $0x18] sm:$0xf] %v399
    %432 = vst [vmem:[#allocation2 + $0x1c] sm:$0xf] %v400
    %433 = vst [vmem:[#allocation2 + $0x20] sm:$0xf] %v401
    %434 = vst [vmem:[#allocation2 + $0x24] sm:$0xf] %v402
    %435 = vst [vmem:[#allocation2 + $0x28] sm:$0xf] %v403
    %436 = vst [vmem:[#allocation2 + $0x2c] sm:$0xf] %v404
    %437 = vst [vmem:[#allocation2 + $0x30] sm:$0xf] %v405
    %438 = vst [vmem:[#allocation2 + $0x34] sm:$0xf] %v406
    %439 = vst [vmem:[#allocation2 + $0x38] sm:$0xf] %v407
    %440 = vst [vmem:[#allocation2 + $0x3c] sm:$0xf] %v408
    %v441 = vadd.f32 %v186, %v190
    %v442 = vadd.f32 %v441, %v196
    %v443 = vadd.f32 %v442, %v200
    %v444 = vadd.f32 %v443, %v206
    %v445 = vadd.f32 %v444, %v210
    %v446 = vadd.f32 %v445, %v216
    %v447 = vadd.f32 %v446, %v220
    %v448 = vadd.f32 %v447, %v226
    %v449 = vadd.f32 %v448, %v230
    %v450 = vadd.f32 %v449, %v236
    %v451 = vadd.f32 %v450, %v240
    %v452 = vadd.f32 %v451, %v246
    %v453 = vadd.f32 %v452, %v250
    %v454 = vadd.f32 %v453, %v256
    %v455 = vadd.f32 %v454, %v260
    %v456 = vrot.slane %v455, 4
    %v457 = vadd.f32 %v455, %v456
    %v458 = vrot.slane %v457, 2
    %v459 = vadd.f32 %v457, %v458
    %v460 = vrot.slane %v459, 1
    %v461 = vadd.f32 %v459, %v460
    %v462 = vmul.f32 %v186, %v186
    %v463 = vmul.f32 %v190, %v190
    %v464 = vmul.f32 %v196, %v196
    %v465 = vmul.f32 %v200, %v200
    %v466 = vmul.f32 %v206, %v206
    %v467 = vmul.f32 %v210, %v210
    %v468 = vmul.f32 %v216, %v216
    %v469 = vmul.f32 %v220, %v220
    %v470 = vmul.f32 %v226, %v226
    %v471 = vmul.f32 %v230, %v230
    %v472 = vmul.f32 %v236, %v236
    %v473 = vmul.f32 %v240, %v240
    %v474 = vmul.f32 %v246, %v246
    %v475 = vmul.f32 %v250, %v250
    %v476 = vmul.f32 %v256, %v256
    %v477 = vmul.f32 %v260, %v260
    %v478 = vadd.f32 %v462, %v463
    %v479 = vadd.f32 %v478, %v464
    %v480 = vadd.f32 %v479, %v465
    %v481 = vadd.f32 %v480, %v466
    %v482 = vadd.f32 %v481, %v467
    %v483 = vadd.f32 %v482, %v468
    %v484 = vadd.f32 %v483, %v469
    %v485 = vadd.f32 %v484, %v470
    %v486 = vadd.f32 %v485, %v471
    %v487 = vadd.f32 %v486, %v472
    %v488 = vadd.f32 %v487, %v473
    %v489 = vadd.f32 %v488, %v474
    %v490 = vadd.f32 %v489, %v475
    %v491 = vadd.f32 %v490, %v476
    %v492 = vadd.f32 %v491, %v477
    %v493 = vrot.slane %v492, 4
    %v494 = vadd.f32 %v492, %v493
    %v495 = vrot.slane %v494, 2
    %v496 = vadd.f32 %v494, %v495
    %v497 = vrot.slane %v496, 1
    %v498 = vadd.f32 %v496, %v497
    %vm499 = vcmask 1040384
    %v500 = vsel %vm499, %v461, %v498
    %501 = vst [vmem:[#allocation6] sm:$0x3] %v500
    %v502 = vld [vmem:[%s2] sm:$0x3]
    %v504 = vlaneseq
    %v505 = vshrl.u32 %v504, 7
    %v506 = vsub.s32 0, %v505
    %v507 = vrot.slane %v502, %v506
    %v508 = vlaneseq
    %v509 = vshrl.u32 %v508, 7
    %v510 = vsub.s32 1, %v509
    %v511 = vrot.slane %v502, %v510
    %v514 = vadd.f32 %v188, %v507
    %v515 = vadd.f32 %v299, %v511
    %v516 = vadd.f32 %v192, %v507
    %v517 = vadd.f32 %v302, %v511
    %v518 = vadd.f32 %v198, %v507
    %v519 = vadd.f32 %v307, %v511
    %v520 = vadd.f32 %v202, %v507
    %v521 = vadd.f32 %v310, %v511
    %v522 = vadd.f32 %v208, %v507
    %v523 = vadd.f32 %v315, %v511
    %v524 = vadd.f32 %v212, %v507
    %v525 = vadd.f32 %v318, %v511
    %v526 = vadd.f32 %v218, %v507
    %v527 = vadd.f32 %v323, %v511
    %v528 = vadd.f32 %v222, %v507
    %v529 = vadd.f32 %v326, %v511
    %v530 = vadd.f32 %v228, %v507
    %v531 = vadd.f32 %v331, %v511
    %v532 = vadd.f32 %v232, %v507
    %v533 = vadd.f32 %v334, %v511
    %v534 = vadd.f32 %v238, %v507
    %v535 = vadd.f32 %v339, %v511
    %v536 = vadd.f32 %v242, %v507
    %v537 = vadd.f32 %v342, %v511
    %v538 = vadd.f32 %v248, %v507
    %v539 = vadd.f32 %v347, %v511
    %v540 = vadd.f32 %v252, %v507
    %v541 = vadd.f32 %v350, %v511
    %v542 = vadd.f32 %v258, %v507
    %v543 = vadd.f32 %v355, %v511
    %v544 = vadd.f32 %v262, %v507
    %v545 = vadd.f32 %v358, %v511
    %v546 = vpack.c.bf16 %v516, %v514
    %v547 = vpack.c.bf16 %v517, %v515
    %v548 = vpack.c.bf16 %v520, %v518
    %v549 = vpack.c.bf16 %v521, %v519
    %v550 = vpack.c.bf16 %v524, %v522
    %v551 = vpack.c.bf16 %v525, %v523
    %v552 = vpack.c.bf16 %v528, %v526
    %v553 = vpack.c.bf16 %v529, %v527
    %v554 = vpack.c.bf16 %v532, %v530
    %v555 = vpack.c.bf16 %v533, %v531
    %v556 = vpack.c.bf16 %v536, %v534
    %v557 = vpack.c.bf16 %v537, %v535
    %v558 = vpack.c.bf16 %v540, %v538
    %v559 = vpack.c.bf16 %v541, %v539
    %v560 = vpack.c.bf16 %v544, %v542
    %v561 = vpack.c.bf16 %v545, %v543
    %v578 = vunpack.c.l.b16 %v546
    %v579 = vunpack.c.l.b16 %v547
    %v580 = vunpack.c.h.b16 %v546
    %v581 = vunpack.c.h.b16 %v547
    %v582 = vunpack.c.l.b16 %v548
    %v583 = vunpack.c.l.b16 %v549
    %v584 = vunpack.c.h.b16 %v548
    %v585 = vunpack.c.h.b16 %v549
    %v586 = vunpack.c.l.b16 %v550
    %v587 = vunpack.c.l.b16 %v551
    %v588 = vunpack.c.h.b16 %v550
    %v589 = vunpack.c.h.b16 %v551
    %v590 = vunpack.c.l.b16 %v552
    %v591 = vunpack.c.l.b16 %v553
    %v592 = vunpack.c.h.b16 %v552
    %v593 = vunpack.c.h.b16 %v553
    %v594 = vunpack.c.l.b16 %v554
    %v595 = vunpack.c.l.b16 %v555
    %v596 = vunpack.c.h.b16 %v554
    %v597 = vunpack.c.h.b16 %v555
    %v598 = vunpack.c.l.b16 %v556
    %v599 = vunpack.c.l.b16 %v557
    %v600 = vunpack.c.h.b16 %v556
    %v601 = vunpack.c.h.b16 %v557
    %v602 = vunpack.c.l.b16 %v558
    %v603 = vunpack.c.l.b16 %v559
    %v604 = vunpack.c.h.b16 %v558
    %v605 = vunpack.c.h.b16 %v559
    %v606 = vunpack.c.l.b16 %v560
    %v607 = vunpack.c.l.b16 %v561
    %v608 = vunpack.c.h.b16 %v560
    %v609 = vunpack.c.h.b16 %v561
    %v610 = vpack.c.b16 %v579, %v578
    %v611 = vpack.c.b16 %v581, %v580
    %v612 = vpack.c.b16 %v583, %v582
    %v613 = vpack.c.b16 %v585, %v584
    %v614 = vpack.c.b16 %v587, %v586
    %v615 = vpack.c.b16 %v589, %v588
    %v616 = vpack.c.b16 %v591, %v590
    %v617 = vpack.c.b16 %v593, %v592
    %v618 = vpack.c.b16 %v595, %v594
    %v619 = vpack.c.b16 %v597, %v596
    %v620 = vpack.c.b16 %v599, %v598
    %v621 = vpack.c.b16 %v601, %v600
    %v622 = vpack.c.b16 %v603, %v602
    %v623 = vpack.c.b16 %v605, %v604
    %v624 = vpack.c.b16 %v607, %v606
    %v625 = vpack.c.b16 %v609, %v608
    %642 = vst [vmem:[#allocation4] sm:$0xff] %v610
    %643 = vst [vmem:[#allocation4 + $0x8] sm:$0xff] %v611
    %644 = vst [vmem:[#allocation4 + $0x10] sm:$0xff] %v612
    %645 = vst [vmem:[#allocation4 + $0x18] sm:$0xff] %v613
    %646 = vst [vmem:[#allocation4 + $0x20] sm:$0xff] %v614
    %647 = vst [vmem:[#allocation4 + $0x28] sm:$0xff] %v615
    %648 = vst [vmem:[#allocation4 + $0x30] sm:$0xff] %v616
    %649 = vst [vmem:[#allocation4 + $0x38] sm:$0xff] %v617
    %650 = vst [vmem:[#allocation4 + $0x40] sm:$0xff] %v618
    %651 = vst [vmem:[#allocation4 + $0x48] sm:$0xff] %v619
    %652 = vst [vmem:[#allocation4 + $0x50] sm:$0xff] %v620
    %653 = vst [vmem:[#allocation4 + $0x58] sm:$0xff] %v621
    %654 = vst [vmem:[#allocation4 + $0x60] sm:$0xff] %v622
    %655 = vst [vmem:[#allocation4 + $0x68] sm:$0xff] %v623
    %656 = vst [vmem:[#allocation4 + $0x70] sm:$0xff] %v624
    %657 = vst [vmem:[#allocation4 + $0x78] sm:$0xff] %v625
    %v658 = vadd.f32 %v514, %v516
    %v659 = vadd.f32 %v658, %v518
    %v660 = vadd.f32 %v659, %v520
    %v661 = vadd.f32 %v660, %v522
    %v662 = vadd.f32 %v661, %v524
    %v663 = vadd.f32 %v662, %v526
    %v664 = vadd.f32 %v663, %v528
    %v665 = vadd.f32 %v664, %v530
    %v666 = vadd.f32 %v665, %v532
    %v667 = vadd.f32 %v666, %v534
    %v668 = vadd.f32 %v667, %v536
    %v669 = vadd.f32 %v668, %v538
    %v670 = vadd.f32 %v669, %v540
    %v671 = vadd.f32 %v670, %v542
    %v672 = vadd.f32 %v671, %v544
    %v673 = vrot.slane %v672, 4
    %v674 = vadd.f32 %v672, %v673
    %v675 = vrot.slane %v674, 2
    %v676 = vadd.f32 %v674, %v675
    %v677 = vrot.slane %v676, 1
    %v678 = vadd.f32 %v676, %v677
    %v679 = vadd.f32 %v515, %v517
    %v680 = vadd.f32 %v679, %v519
    %v681 = vadd.f32 %v680, %v521
    %v682 = vadd.f32 %v681, %v523
    %v683 = vadd.f32 %v682, %v525
    %v684 = vadd.f32 %v683, %v527
    %v685 = vadd.f32 %v684, %v529
    %v686 = vadd.f32 %v685, %v531
    %v687 = vadd.f32 %v686, %v533
    %v688 = vadd.f32 %v687, %v535
    %v689 = vadd.f32 %v688, %v537
    %v690 = vadd.f32 %v689, %v539
    %v691 = vadd.f32 %v690, %v541
    %v692 = vadd.f32 %v691, %v543
    %v693 = vadd.f32 %v692, %v545
    %v694 = vrot.slane %v693, 4
    %v695 = vadd.f32 %v693, %v694
    %v696 = vrot.slane %v695, 2
    %v697 = vadd.f32 %v695, %v696
    %v698 = vrot.slane %v697, 1
    %v699 = vadd.f32 %v697, %v698
    %v700 = vmul.f32 %v514, %v514
    %v701 = vmul.f32 %v515, %v515
    %v702 = vmul.f32 %v516, %v516
    %v703 = vmul.f32 %v517, %v517
    %v704 = vmul.f32 %v518, %v518
    %v705 = vmul.f32 %v519, %v519
    %v706 = vmul.f32 %v520, %v520
    %v707 = vmul.f32 %v521, %v521
    %v708 = vmul.f32 %v522, %v522
    %v709 = vmul.f32 %v523, %v523
    %v710 = vmul.f32 %v524, %v524
    %v711 = vmul.f32 %v525, %v525
    %v712 = vmul.f32 %v526, %v526
    %v713 = vmul.f32 %v527, %v527
    %v714 = vmul.f32 %v528, %v528
    %v715 = vmul.f32 %v529, %v529
    %v716 = vmul.f32 %v530, %v530
    %v717 = vmul.f32 %v531, %v531
    %v718 = vmul.f32 %v532, %v532
    %v719 = vmul.f32 %v533, %v533
    %v720 = vmul.f32 %v534, %v534
    %v721 = vmul.f32 %v535, %v535
    %v722 = vmul.f32 %v536, %v536
    %v723 = vmul.f32 %v537, %v537
    %v724 = vmul.f32 %v538, %v538
    %v725 = vmul.f32 %v539, %v539
    %v726 = vmul.f32 %v540, %v540
    %v727 = vmul.f32 %v541, %v541
    %v728 = vmul.f32 %v542, %v542
    %v729 = vmul.f32 %v543, %v543
    %v730 = vmul.f32 %v544, %v544
    %v731 = vmul.f32 %v545, %v545
    %v732 = vadd.f32 %v700, %v702
    %v733 = vadd.f32 %v732, %v704
    %v734 = vadd.f32 %v733, %v706
    %v735 = vadd.f32 %v734, %v708
    %v736 = vadd.f32 %v735, %v710
    %v737 = vadd.f32 %v736, %v712
    %v738 = vadd.f32 %v737, %v714
    %v739 = vadd.f32 %v738, %v716
    %v740 = vadd.f32 %v739, %v718
    %v741 = vadd.f32 %v740, %v720
    %v742 = vadd.f32 %v741, %v722
    %v743 = vadd.f32 %v742, %v724
    %v744 = vadd.f32 %v743, %v726
    %v745 = vadd.f32 %v744, %v728
    %v746 = vadd.f32 %v745, %v730
    %v747 = vrot.slane %v746, 4
    %v748 = vadd.f32 %v746, %v747
    %v749 = vrot.slane %v748, 2
    %v750 = vadd.f32 %v748, %v749
    %v751 = vrot.slane %v750, 1
    %v752 = vadd.f32 %v750, %v751
    %v753 = vadd.f32 %v701, %v703
    %v754 = vadd.f32 %v753, %v705
    %v755 = vadd.f32 %v754, %v707
    %v756 = vadd.f32 %v755, %v709
    %v757 = vadd.f32 %v756, %v711
    %v758 = vadd.f32 %v757, %v713
    %v759 = vadd.f32 %v758, %v715
    %v760 = vadd.f32 %v759, %v717
    %v761 = vadd.f32 %v760, %v719
    %v762 = vadd.f32 %v761, %v721
    %v763 = vadd.f32 %v762, %v723
    %v764 = vadd.f32 %v763, %v725
    %v765 = vadd.f32 %v764, %v727
    %v766 = vadd.f32 %v765, %v729
    %v767 = vadd.f32 %v766, %v731
    %v768 = vrot.slane %v767, 4
    %v769 = vadd.f32 %v767, %v768
    %v770 = vrot.slane %v769, 2
    %v771 = vadd.f32 %v769, %v770
    %v772 = vrot.slane %v771, 1
    %v773 = vadd.f32 %v771, %v772
    %v774 = vsel %vm499, %v678, %v752
    %v775 = vsel %vm499, %v699, %v773
    %v778 = vcombine.low %v774, %v775
    %v780 = vunpack.c.l.s4 1983009808
    %v781 = vunpack.c.0.s8 %v780
    %v782 = vlaneseq
    %v783 = vshrl.u32 %v782, 7
    %v784 = vsub.s32 %v781, %v783
    %v785 = vrot.slane %v778, %v784
    %787 = vst [vmem:[#allocation7] sm:$0xf] %v785
    // Predicated region
    $region14: #{tpu_custom_call.1} parent=1 // pred_check
      _
    $region15: #{tpu_custom_call.1} parent=1 // pred_check_branch
      %789 = sbr.rel (0) target = $region17
    $region16: #{tpu_custom_call.1} parent=1 // pred_region
      %s791 = ssub.s32 1024, 1024
      %792 = vsyncadd [#allocation3], %s791
      %s793 = sshll.u32 [#allocation2], 4
      %s794 = int_to_ptr.vmem [resolvable:$true] %s793
      %799 = dma.vmem_to_hbm [thread:$0]  %s794, 1024, %s3, [#allocation3], 64, 64, 4
    $region17: #{tpu_custom_call.1} parent=1 // pred_fallthru
      _
    // Predicated region
    $region18: #{tpu_custom_call.1} parent=1 // pred_check
      _
    $region19: #{tpu_custom_call.1} parent=1 // pred_check_branch
      %801 = sbr.rel (0) target = $region21
    $region20: #{tpu_custom_call.1} parent=1 // pred_region
      %s803 = ssub.s32 2048, 2048
      %804 = vsyncadd [#allocation5], %s803
      %s805 = sshll.u32 [#allocation4], 4
      %s806 = int_to_ptr.vmem [resolvable:$true] %s805
      %811 = dma.vmem_to_hbm [thread:$0]  %s806, 2048, %s4, [#allocation5], 128, 128, 8
    $region21: #{tpu_custom_call.1} parent=1 // pred_fallthru
      _
    // Predicated region
    $region22: #{tpu_custom_call.1} parent=1 // pred_check
      _
    $region23: #{tpu_custom_call.1} parent=1 // pred_check_branch
      %813 = sbr.rel (0) target = $region25
    $region24: #{tpu_custom_call.1} parent=1 // pred_region
      %s815 = ssub.s32 32, 32
      %816 = vsyncadd [#allocation5], %s815
      %s818 = sshll.u32 [#allocation6], 4
      %s819 = int_to_ptr.vmem [resolvable:$true] %s818
      %821 = dma.vmem_to_hbm [thread:$0]  %s819, 32, %s5, [#allocation5]
    $region25: #{tpu_custom_call.1} parent=1 // pred_fallthru
      _
    // Predicated region
    $region26: #{tpu_custom_call.1} parent=1 // pred_check
      _
    $region27: #{tpu_custom_call.1} parent=1 // pred_check_branch
      %823 = sbr.rel (0) target = $region29
    $region28: #{tpu_custom_call.1} parent=1 // pred_region
      %s825 = ssub.s32 64, 64
      %826 = vsyncadd [#allocation8], %s825
      %s828 = sshll.u32 [#allocation7], 4
      %s829 = int_to_ptr.vmem [resolvable:$true] %s828
      %831 = dma.vmem_to_hbm [thread:$0]  %s829, 64, %s6, [#allocation8]
    $region29: #{tpu_custom_call.1} parent=1 // pred_fallthru
      _
    // Predicated region
    $region30: #{tpu_custom_call.1} parent=1 // pred_check
      _
    $region31: #{tpu_custom_call.1} parent=1 // pred_check_branch
      %833 = sbr.rel (0) target = $region33
    $region32: #{tpu_custom_call.1} parent=1 // pred_region
      %834 = dma.done [#allocation3], 1024
    $region33: #{tpu_custom_call.1} parent=1 // pred_fallthru
      _
    // Predicated region
    $region34: #{tpu_custom_call.1} parent=1 // pred_check
      _
    $region35: #{tpu_custom_call.1} parent=1 // pred_check_branch
      %836 = sbr.rel (0) target = $region37
    $region36: #{tpu_custom_call.1} parent=1 // pred_region
      %837 = dma.done [#allocation5], 2048
    $region37: #{tpu_custom_call.1} parent=1 // pred_fallthru
      _
    // Predicated region
    $region38: #{tpu_custom_call.1} parent=1 // pred_check
      _
    $region39: #{tpu_custom_call.1} parent=1 // pred_check_branch
      %839 = sbr.rel (0) target = $region41
    $region40: #{tpu_custom_call.1} parent=1 // pred_region
      %840 = dma.done [#allocation5], 32
    $region41: #{tpu_custom_call.1} parent=1 // pred_fallthru
      _
    // Predicated region
    $region42: #{tpu_custom_call.1} parent=1 // pred_check
      _
    $region43: #{tpu_custom_call.1} parent=1 // pred_check_branch
      %842 = sbr.rel (0) target = $region45
    $region44: #{tpu_custom_call.1} parent=1 // pred_region
      %843 = dma.done [#allocation8], 64
    $region45: #{tpu_custom_call.1} parent=1 // pred_fallthru
      _
    %844 = vsyncpa [#allocation3], 1
    %845 = vsyncpa [#allocation5], 1
    %846 = vsyncpa [#allocation8], 1

</llo_original>
